<compile_context>
chip_gen: v7x
topology: tpu7x:2x2x1
jax: 0.10.0
libtpu: 0.0.40
codegen_flags: <defaults>
</compile_context>

<pallas_src>
import math

import numpy as np
import jax
import jax.numpy as jnp
from jax import lax
from jax.experimental import pallas as pl
from jax.experimental.pallas import tpu as pltpu


def _make_sepconv_kernel(W, HW, f_sz, dilate, p1):
    def kernel(x_ref, m_ref, w_ref, o_ref):
        # x_ref : (N*Cin, HW)            whole batch, spatial dims flattened
        # m_ref : (f*f, 1, HW)           precomputed per-tap boundary masks
        # w_ref : (N*Cout, f*f*N*Cin)    fused depthwise+pointwise weights
        # o_ref : (N*Cout, HW)
        x = x_ref[...].astype(jnp.float32)                     # (N*Cin, HW)

        tiles = []
        for ky in range(f_sz):
            for kx in range(f_sz):
                t = ky * f_sz + kx
                # flat-index shift of this tap
                s = (ky * dilate - p1) * W + (kx * dilate - p1)
                if s % HW == 0:
                    shifted = x
                else:
                    # out[p] = x[p + s]  ->  roll by (-s) mod HW (XLU work).
                    shifted = pltpu.roll(x, (-s) % HW, axis=1)
                # Zero positions whose source pixel is outside the image
                # (mask broadcasts (1, HW) over the N*Cin sublanes).
                tiles.append(shifted * m_ref[t])

        # (f*f*N*Cin, HW): 8-sublane-aligned pieces -> cheap concatenate.
        stacked = jnp.concatenate(tiles, axis=0)

        # One fused matmul does both the depthwise taps and the 1x1 conv.
        y = jnp.dot(w_ref[...], stacked, preferred_element_type=jnp.float32)
        o_ref[...] = y.astype(o_ref.dtype)

    return kernel


def sepconv_pallas(x_nchw, w1_oihw, w2_oihw, f_sz, dilate=1):
    """Forward pass of SepConv.  x_nchw: [N, Cin, H, W]."""
    N, Cin, H, W = x_nchw.shape
    Cout = w2_oihw.shape[0]

    p1 = f_sz // 2 + dilate - 1            # conv1 padding
    p2 = (1 // 2) + dilate - 1             # conv2 padding (1x1 kernel)
    H1 = H + 2 * p1 - dilate * (f_sz - 1)  # spatial size after conv1
    W1 = W + 2 * p1 - dilate * (f_sz - 1)

    if (H1, W1) != (H, W):
        # TODO(synk): generalize the roll/mask tap scheme to configs where the
        # depthwise conv changes the spatial size (even f_sz, etc.).
        raise NotImplementedError(
            "sepconv_pallas supports configs with H1==H and W1==W "
            "(odd f_sz with dilate==1, or f_sz==3 with any dilate)")

    HW = H * W
    taps = f_sz * f_sz

    # Free contiguous reshape (no transpose, no data movement).
    x_flat = x_nchw.reshape(N * Cin, HW)

    # --- grid-invariant boundary masks, built host-side with numpy ---------
    flat = np.arange(HW)
    row, col = flat // W, flat % W
    masks = np.empty((taps, 1, HW), np.float32)
    for ky in range(f_sz):
        dy = ky * dilate - p1
        for kx in range(f_sz):
            dx = kx * dilate - p1
            valid = ((row + dy >= 0) & (row + dy < H) &
                     (col + dx >= 0) & (col + dx < W))
            masks[ky * f_sz + kx, 0] = valid.astype(np.float32)
    masks = jnp.asarray(masks)

    # --- fused depthwise+pointwise weight (tiny; a few hundred floats) -----
    # w_eff[n*Cout+co, t*N*Cin + m*Cin + ci] = delta(n,m) * w2[co,ci] * w1[t,ci]
    w1_taps = jnp.transpose(w1_oihw[:, 0, :, :].reshape(Cin, taps),
                            (1, 0)).astype(jnp.float32)        # (taps, Cin)
    w2_k = w2_oihw[:, :, 0, 0].astype(jnp.float32)             # (Cout, Cin)
    eye_n = jnp.eye(N, dtype=jnp.float32)
    blocks = [jnp.kron(eye_n, w2_k * w1_taps[t][None, :]) for t in range(taps)]
    w_eff = jnp.concatenate(blocks, axis=1)                    # (N*Cout, taps*N*Cin)

    kernel = _make_sepconv_kernel(W, HW, f_sz, dilate, p1)

    itemsize = jnp.dtype(x_nchw.dtype).itemsize
    flops = 2 * N * HW * Cin * (taps + Cout)
    bytes_accessed = ((N * Cin + N * Cout) * HW * itemsize
                      + 4 * (masks.size + w_eff.size))

    out_flat = pl.pallas_call(
        kernel,
        out_shape=jax.ShapeDtypeStruct((N * Cout, HW), x_nchw.dtype),
        grid_spec=pltpu.PrefetchScalarGridSpec(
            num_scalar_prefetch=0,
            grid=(1,),
            in_specs=[
                pl.BlockSpec((N * Cin, HW), lambda i: (0, 0)),
                pl.BlockSpec((taps, 1, HW), lambda i: (0, 0, 0)),
                pl.BlockSpec((N * Cout, taps * N * Cin), lambda i: (0, 0)),
            ],
            out_specs=pl.BlockSpec((N * Cout, HW), lambda i: (0, 0)),
        ),
        compiler_params=pltpu.CompilerParams(
            dimension_semantics=("arbitrary",)),
        cost_estimate=pl.CostEstimate(
            flops=flops, transcendentals=0, bytes_accessed=bytes_accessed),
    )(x_flat, masks, w_eff)

    # Free contiguous reshape back to NCHW.
    out = out_flat.reshape(N, Cout, H1, W1)

    # conv2 has padding = dilate-1 with a 1x1 kernel and no bias: that adds a
    # zero border of width p2 (p2 == 0 in the common dilate=1 case).
    if p2 > 0:
        out = jnp.pad(out, ((0, 0), (0, 0), (p2, p2), (p2, p2)))
    return out


def _kaiming_uniform_fan_out(key, shape, gain=math.sqrt(2.0)):
    # PyTorch kaiming_uniform_(mode='fan_out', nonlinearity='relu') on a conv
    # weight [O, I, kh, kw]: fan_out = O * kh * kw.
    fan_out = shape[0] * shape[2] * shape[3]
    bound = gain * math.sqrt(3.0 / fan_out)
    return jax.random.uniform(key, shape, jnp.float32, -bound, bound)


def _reference_sepconv(x, w1, w2, f_sz, dilate=1):
    # Pure-JAX reference (lax conv) matching nn.Conv2d semantics, for checking.
    p1 = f_sz // 2 + dilate - 1
    p2 = (1 // 2) + dilate - 1
    y = lax.conv_general_dilated(
        x, w1, window_strides=(1, 1), padding=[(p1, p1), (p1, p1)],
        rhs_dilation=(dilate, dilate), feature_group_count=x.shape[1],
        dimension_numbers=("NCHW", "OIHW", "NCHW"))
    y = lax.conv_general_dilated(
        y, w2, window_strides=(1, 1), padding=[(p2, p2), (p2, p2)],
        rhs_dilation=(dilate, dilate),
        dimension_numbers=("NCHW", "OIHW", "NCHW"))
    return y


if __name__ == "__main__":
    # Module config (small, consistent with SepConv(in_ch, f_ch, f_sz)).
    in_ch, f_ch, f_sz = 4, 8, 3
    N, H, W = 2, 16, 16

    key = jax.random.PRNGKey(0)
    k_x, k_w1, k_w2 = jax.random.split(key, 3)

    x = jax.random.normal(k_x, (N, in_ch, H, W), jnp.float32)
    # conv1: depthwise, weight shape [in_ch, 1, f, f]
    w1 = _kaiming_uniform_fan_out(k_w1, (in_ch, 1, f_sz, f_sz))
    # conv2: pointwise, weight shape [f_ch, in_ch, 1, 1]
    w2 = _kaiming_uniform_fan_out(k_w2, (f_ch, in_ch, 1, 1))

    # dilate=1 is the primary config; dilate=2 exercises the dilation masks,
    # the p1 formulas and the p2 zero border.
    for dilate in (1, 2):
        out = jax.block_until_ready(sepconv_pallas(x, w1, w2, f_sz, dilate))
        ref = jax.block_until_ready(_reference_sepconv(x, w1, w2, f_sz, dilate))
        assert out.shape == ref.shape, (dilate, out.shape, ref.shape)
        assert jnp.allclose(out, ref, atol=1e-4, rtol=1e-4), dilate

    print("KERNEL_OK")
</pallas_src>

<mosaic_0001>
module attributes {stable_mosaic.version = 11 : i64} {
  func.func @kernel(%arg0: i32, %arg1: memref<8x256xf32, #tpu.memory_space<vmem>>, %arg2: memref<9x1x256xf32, #tpu.memory_space<vmem>>, %arg3: memref<16x72xf32, #tpu.memory_space<vmem>>, %arg4: memref<16x256xf32, #tpu.memory_space<vmem>>) attributes {dimension_semantics = [#tpu.dimension_semantics<arbitrary>], iteration_bounds = array<i64: 1>, scalar_prefetch = 0 : i64, scratch_operands = 0 : i64, tpu.core_type = #tpu.core_type<tc>, window_params = [{pipeline_mode = #tpu.pipeline_mode<synchronous>, transform_indices = @transform_0, window_bounds = array<i64: 8, 256>}, {pipeline_mode = #tpu.pipeline_mode<synchronous>, transform_indices = @transform_1, window_bounds = array<i64: 9, 1, 256>}, {pipeline_mode = #tpu.pipeline_mode<synchronous>, transform_indices = @transform_2, window_bounds = array<i64: 16, 72>}, {pipeline_mode = #tpu.pipeline_mode<synchronous>, transform_indices = @transform_3, window_bounds = array<i64: 16, 256>}]} {
    %c0 = arith.constant 0 : index
    %c0_0 = arith.constant 0 : index
    %0 = vector.load %arg1[%c0, %c0_0] : memref<8x256xf32, #tpu.memory_space<vmem>>, vector<8x256xf32>
    %c17_i32 = arith.constant 17 : i32
    %1 = tpu.dynamic_rotate %0 by %c17_i32 dim 1 : vector<8x256xf32>, i32 -> vector<8x256xf32>
    %c0_1 = arith.constant 0 : index
    %c0_2 = arith.constant 0 : index
    %c0_3 = arith.constant 0 : index
    %2 = vector.load %arg2[%c0_1, %c0_2, %c0_3] : memref<9x1x256xf32, #tpu.memory_space<vmem>>, vector<1x1x256xf32>
    %3 = vector.shape_cast %2 : vector<1x1x256xf32> to vector<1x256xf32>
    %4 = vector.broadcast %3 : vector<1x256xf32> to vector<8x256xf32>
    %5 = arith.mulf %1, %4 : vector<8x256xf32>
    %c16_i32 = arith.constant 16 : i32
    %6 = tpu.dynamic_rotate %0 by %c16_i32 dim 1 : vector<8x256xf32>, i32 -> vector<8x256xf32>
    %c1 = arith.constant 1 : index
    %c0_4 = arith.constant 0 : index
    %c0_5 = arith.constant 0 : index
    %7 = vector.load %arg2[%c1, %c0_4, %c0_5] : memref<9x1x256xf32, #tpu.memory_space<vmem>>, vector<1x1x256xf32>
    %8 = vector.shape_cast %7 : vector<1x1x256xf32> to vector<1x256xf32>
    %9 = vector.broadcast %8 : vector<1x256xf32> to vector<8x256xf32>
    %10 = arith.mulf %6, %9 : vector<8x256xf32>
    %c15_i32 = arith.constant 15 : i32
    %11 = tpu.dynamic_rotate %0 by %c15_i32 dim 1 : vector<8x256xf32>, i32 -> vector<8x256xf32>
    %c2 = arith.constant 2 : index
    %c0_6 = arith.constant 0 : index
    %c0_7 = arith.constant 0 : index
    %12 = vector.load %arg2[%c2, %c0_6, %c0_7] : memref<9x1x256xf32, #tpu.memory_space<vmem>>, vector<1x1x256xf32>
    %13 = vector.shape_cast %12 : vector<1x1x256xf32> to vector<1x256xf32>
    %14 = vector.broadcast %13 : vector<1x256xf32> to vector<8x256xf32>
    %15 = arith.mulf %11, %14 : vector<8x256xf32>
    %c1_i32 = arith.constant 1 : i32
    %16 = tpu.dynamic_rotate %0 by %c1_i32 dim 1 : vector<8x256xf32>, i32 -> vector<8x256xf32>
    %c3 = arith.constant 3 : index
    %c0_8 = arith.constant 0 : index
    %c0_9 = arith.constant 0 : index
    %17 = vector.load %arg2[%c3, %c0_8, %c0_9] : memref<9x1x256xf32, #tpu.memory_space<vmem>>, vector<1x1x256xf32>
    %18 = vector.shape_cast %17 : vector<1x1x256xf32> to vector<1x256xf32>
    %19 = vector.broadcast %18 : vector<1x256xf32> to vector<8x256xf32>
    %20 = arith.mulf %16, %19 : vector<8x256xf32>
    %c4 = arith.constant 4 : index
    %c0_10 = arith.constant 0 : index
    %c0_11 = arith.constant 0 : index
    %21 = vector.load %arg2[%c4, %c0_10, %c0_11] : memref<9x1x256xf32, #tpu.memory_space<vmem>>, vector<1x1x256xf32>
    %22 = vector.shape_cast %21 : vector<1x1x256xf32> to vector<1x256xf32>
    %23 = vector.broadcast %22 : vector<1x256xf32> to vector<8x256xf32>
    %24 = arith.mulf %0, %23 : vector<8x256xf32>
    %c255_i32 = arith.constant 255 : i32
    %25 = tpu.dynamic_rotate %0 by %c255_i32 dim 1 : vector<8x256xf32>, i32 -> vector<8x256xf32>
    %c5 = arith.constant 5 : index
    %c0_12 = arith.constant 0 : index
    %c0_13 = arith.constant 0 : index
    %26 = vector.load %arg2[%c5, %c0_12, %c0_13] : memref<9x1x256xf32, #tpu.memory_space<vmem>>, vector<1x1x256xf32>
    %27 = vector.shape_cast %26 : vector<1x1x256xf32> to vector<1x256xf32>
    %28 = vector.broadcast %27 : vector<1x256xf32> to vector<8x256xf32>
    %29 = arith.mulf %25, %28 : vector<8x256xf32>
    %c241_i32 = arith.constant 241 : i32
    %30 = tpu.dynamic_rotate %0 by %c241_i32 dim 1 : vector<8x256xf32>, i32 -> vector<8x256xf32>
    %c6 = arith.constant 6 : index
    %c0_14 = arith.constant 0 : index
    %c0_15 = arith.constant 0 : index
    %31 = vector.load %arg2[%c6, %c0_14, %c0_15] : memref<9x1x256xf32, #tpu.memory_space<vmem>>, vector<1x1x256xf32>
    %32 = vector.shape_cast %31 : vector<1x1x256xf32> to vector<1x256xf32>
    %33 = vector.broadcast %32 : vector<1x256xf32> to vector<8x256xf32>
    %34 = arith.mulf %30, %33 : vector<8x256xf32>
    %c240_i32 = arith.constant 240 : i32
    %35 = tpu.dynamic_rotate %0 by %c240_i32 dim 1 : vector<8x256xf32>, i32 -> vector<8x256xf32>
    %c7 = arith.constant 7 : index
    %c0_16 = arith.constant 0 : index
    %c0_17 = arith.constant 0 : index
    %36 = vector.load %arg2[%c7, %c0_16, %c0_17] : memref<9x1x256xf32, #tpu.memory_space<vmem>>, vector<1x1x256xf32>
    %37 = vector.shape_cast %36 : vector<1x1x256xf32> to vector<1x256xf32>
    %38 = vector.broadcast %37 : vector<1x256xf32> to vector<8x256xf32>
    %39 = arith.mulf %35, %38 : vector<8x256xf32>
    %c239_i32 = arith.constant 239 : i32
    %40 = tpu.dynamic_rotate %0 by %c239_i32 dim 1 : vector<8x256xf32>, i32 -> vector<8x256xf32>
    %c8 = arith.constant 8 : index
    %c0_18 = arith.constant 0 : index
    %c0_19 = arith.constant 0 : index
    %41 = vector.load %arg2[%c8, %c0_18, %c0_19] : memref<9x1x256xf32, #tpu.memory_space<vmem>>, vector<1x1x256xf32>
    %42 = vector.shape_cast %41 : vector<1x1x256xf32> to vector<1x256xf32>
    %43 = vector.broadcast %42 : vector<1x256xf32> to vector<8x256xf32>
    %44 = arith.mulf %40, %43 : vector<8x256xf32>
    %45 = tpu.concatenate %5, %10, %15, %20, %24, %29, %34, %39, %44 in 0 : vector<8x256xf32>, vector<8x256xf32>, vector<8x256xf32>, vector<8x256xf32>, vector<8x256xf32>, vector<8x256xf32>, vector<8x256xf32>, vector<8x256xf32>, vector<8x256xf32> -> vector<72x256xf32>
    %c0_20 = arith.constant 0 : index
    %c0_21 = arith.constant 0 : index
    %46 = vector.load %arg3[%c0_20, %c0_21] : memref<16x72xf32, #tpu.memory_space<vmem>>, vector<16x72xf32>
    %cst = arith.constant dense<0.000000e+00> : vector<16x256xf32>
    %47 = tpu.matmul %46, %45, %cst {dimension_numbers = #tpu.dot_dimension_numbers<[1], [0], [0], [1], [0, 0, 1, 1], [], []>} : vector<16x72xf32>, vector<72x256xf32>, vector<16x256xf32> -> vector<16x256xf32>
    %c0_22 = arith.constant 0 : index
    %c0_23 = arith.constant 0 : index
    %48 = vector.load %arg4[%c0_22, %c0_23] : memref<16x256xf32, #tpu.memory_space<vmem>>, vector<16x256xf32>
    tpu.vector_store %arg4[%c0_22, %c0_23], %47 {strides = array<i32>} : memref<16x256xf32, #tpu.memory_space<vmem>>, vector<16x256xf32>,
    return
  }
  func.func @transform_0(%arg0: i32) -> (i32, i32) {
    %c0_i32 = arith.constant 0 : i32
    %c0_i32_0 = arith.constant 0 : i32
    %c0_i32_1 = arith.constant 0 : i32
    return %c0_i32, %c0_i32_0 : i32, i32
  }
  func.func @transform_1(%arg0: i32) -> (i32, i32, i32) {
    %c0_i32 = arith.constant 0 : i32
    %c0_i32_0 = arith.constant 0 : i32
    %c0_i32_1 = arith.constant 0 : i32
    %c0_i32_2 = arith.constant 0 : i32
    return %c0_i32, %c0_i32_0, %c0_i32_1 : i32, i32, i32
  }
  func.func @transform_2(%arg0: i32) -> (i32, i32) {
    %c0_i32 = arith.constant 0 : i32
    %c0_i32_0 = arith.constant 0 : i32
    %c0_i32_1 = arith.constant 0 : i32
    return %c0_i32, %c0_i32_0 : i32, i32
  }
  func.func @transform_3(%arg0: i32) -> (i32, i32) {
    %c0_i32 = arith.constant 0 : i32
    %c0_i32_0 = arith.constant 0 : i32
    %c0_i32_1 = arith.constant 0 : i32
    return %c0_i32, %c0_i32_0 : i32, i32
  }
}

</mosaic_0001>

<llo_original>
// kernel: tpu_custom_call.1
$region0: #{tpu_custom_call.1}
  #allocation0 [shape = 'u32[]', space=smem, size = 0x4, offset = 0x4, fixed_abs, tag = 'smem constant byte address 0x4 - core index']
  #allocation1 [shape = 'u32[144,128]{1,0:T(1,128)}', space=vmem, size = 0x12000, scoped, tag = 'internal scratch']
  %s0 = inlined_call_operand.hbm [shape: f32[8,256], index: 0, kind: input, shape index: {}]
  %s1 = inlined_call_operand.hbm [shape: f32[9,1,256], index: 1, kind: input, shape index: {}]
  %s2 = inlined_call_operand.hbm [shape: f32[16,72], index: 2, kind: input, shape index: {}]
  %s3 = inlined_call_operand.hbm [shape: f32[16,256], index: 3, kind: output, shape index: {}]
  %s4 = sld [smem:[#allocation0]]
  $region34: #{tpu_custom_call.1} parent=0
    _
  %s6 = ssub.s32 1, %s4
  %s7 = scalar_select 0, %s6, %s4
  $region1: #{tpu_custom_call.1} parent=0
    #allocation2 [shape = 'u8[8192]{0}', space=vmem, size = 0x2000, scoped, tag = 'input window, operand 0, single buffered']
    #allocation3 [shape = 's32[1]{0}', space=sflag, size = 0x4, scoped, tag = 'scoped memory for tpu_custom_call.1']
    #allocation4 [shape = 's32[1]{0}', space=sflag, size = 0x4, scoped, tag = 'scoped memory for tpu_custom_call.1']
    #allocation5 [shape = 'u8[9216]{0}', space=vmem, size = 0x2400, scoped, tag = 'input window, operand 1, single buffered']
    #allocation6 [shape = 's32[1]{0}', space=sflag, size = 0x4, scoped, tag = 'scoped memory for tpu_custom_call.1']
    #allocation7 [shape = 'u8[8192]{0}', space=vmem, size = 0x2000, scoped, tag = 'input window, operand 2, single buffered']
    #allocation8 [shape = 'u8[16384]{0}', space=vmem, size = 0x4000, scoped, tag = 'output window, operand 0, single buffered']
    %8 = vsyncpa [#allocation3], 0
    %9 = vsyncpa [#allocation6], 0
    %10 = vsyncpa [#allocation4], 0
    // Predicated region
    $region2: #{tpu_custom_call.1} parent=1 // pred_check
      _
    $region3: #{tpu_custom_call.1} parent=1 // pred_check_branch
      %12 = sbr.rel (0) target = $region5
    $region4: #{tpu_custom_call.1} parent=1 // pred_region
      %s14 = ssub.s32 256, 256
      %15 = vsyncadd [#allocation3], %s14
      %s17 = sshll.u32 [#allocation2], 4
      %s18 = int_to_ptr.vmem [resolvable:$true] %s17
      %20 = dma.hbm_to_vmem [thread:$0]  %s0, 256, %s18, [#allocation3]
    $region5: #{tpu_custom_call.1} parent=1 // pred_fallthru
      _
    // Predicated region
    $region6: #{tpu_custom_call.1} parent=1 // pred_check
      _
    $region7: #{tpu_custom_call.1} parent=1 // pred_check_branch
      %22 = sbr.rel (0) target = $region9
    $region8: #{tpu_custom_call.1} parent=1 // pred_region
      %s24 = ssub.s32 288, 288
      %25 = vsyncadd [#allocation6], %s24
      %s26 = sshll.u32 [#allocation5], 4
      %s27 = int_to_ptr.vmem [resolvable:$true] %s26
      %32 = dma.hbm_to_vmem [thread:$0]  %s1, 288, %s27, [#allocation6], 32, 32, 2
    $region9: #{tpu_custom_call.1} parent=1 // pred_fallthru
      _
    // Predicated region
    $region10: #{tpu_custom_call.1} parent=1 // pred_check
      _
    $region11: #{tpu_custom_call.1} parent=1 // pred_check_branch
      %34 = sbr.rel (0) target = $region13
    $region12: #{tpu_custom_call.1} parent=1 // pred_region
      %s36 = ssub.s32 256, 256
      %37 = vsyncadd [#allocation6], %s36
      %s38 = sshll.u32 [#allocation7], 4
      %s39 = int_to_ptr.vmem [resolvable:$true] %s38
      %44 = dma.hbm_to_vmem [thread:$0]  %s2, 256, %s39, [#allocation6], 128, 128, 8
    $region13: #{tpu_custom_call.1} parent=1 // pred_fallthru
      _
    // Predicated region
    $region14: #{tpu_custom_call.1} parent=1 // pred_check
      _
    $region15: #{tpu_custom_call.1} parent=1 // pred_check_branch
      %46 = sbr.rel (0) target = $region17
    $region16: #{tpu_custom_call.1} parent=1 // pred_region
      %47 = dma.done [#allocation3], 256
    $region17: #{tpu_custom_call.1} parent=1 // pred_fallthru
      _
    // Predicated region
    $region18: #{tpu_custom_call.1} parent=1 // pred_check
      _
    $region19: #{tpu_custom_call.1} parent=1 // pred_check_branch
      %49 = sbr.rel (0) target = $region21
    $region20: #{tpu_custom_call.1} parent=1 // pred_region
      %50 = dma.done [#allocation6], 288
    $region21: #{tpu_custom_call.1} parent=1 // pred_fallthru
      _
    // Predicated region
    $region22: #{tpu_custom_call.1} parent=1 // pred_check
      _
    $region23: #{tpu_custom_call.1} parent=1 // pred_check_branch
      %52 = sbr.rel (0) target = $region25
    $region24: #{tpu_custom_call.1} parent=1 // pred_region
      %53 = dma.done [#allocation6], 256
    $region25: #{tpu_custom_call.1} parent=1 // pred_fallthru
      _
    %v54 = vld [vmem:[#allocation2] sm:$0xff]
    %v55 = vld [vmem:[#allocation2 + $0x8] sm:$0xff]
    %56 = vrot.lane.b32.xlu0 %v54, 17
    %v57 = vpop.permute.xlu0 %56
    %58 = vrot.lane.b32.xlu0 %v55, 17
    %v59 = vpop.permute.xlu0 %58
    %v60 = vlaneseq
    %v61 = vand.u32 %v60, 127
    %vm62 = vcmp.lt.s32.totalorder %v61, 17
    %v63 = vsel %vm62, %v57, %v59
    %v64 = vsel %vm62, %v59, %v57
    %v65 = vld [vmem:[#allocation5] sm:$0x3]
    %v67 = vlaneseq
    %v68 = vshrl.u32 %v67, 7
    %v69 = vsub.s32 0, %v68
    %v70 = vrot.slane %v65, %v69
    %v71 = vlaneseq
    %v72 = vshrl.u32 %v71, 7
    %v73 = vsub.s32 1, %v72
    %v74 = vrot.slane %v65, %v73
    %v77 = vmul.f32 %v64, %v70
    %v78 = vmul.f32 %v63, %v74
    %79 = vrot.lane.b32.xlu0 %v54, 16
    %v80 = vpop.permute.xlu0 %79
    %81 = vrot.lane.b32.xlu0 %v55, 16
    %v82 = vpop.permute.xlu0 %81
    %vm83 = vcmp.lt.s32.totalorder %v61, 16
    %v84 = vsel %vm83, %v80, %v82
    %v85 = vsel %vm83, %v82, %v80
    %s86 = scalar_lea.vmem [#allocation5], 2
    %v87 = vld [vmem:[%s86] sm:$0x3]
    %v89 = vlaneseq
    %v90 = vshrl.u32 %v89, 7
    %v91 = vsub.s32 0, %v90
    %v92 = vrot.slane %v87, %v91
    %v93 = vlaneseq
    %v94 = vshrl.u32 %v93, 7
    %v95 = vsub.s32 1, %v94
    %v96 = vrot.slane %v87, %v95
    %v99 = vmul.f32 %v85, %v92
    %v100 = vmul.f32 %v84, %v96
    %101 = vrot.lane.b32.xlu0 %v54, 15
    %v102 = vpop.permute.xlu0 %101
    %103 = vrot.lane.b32.xlu0 %v55, 15
    %v104 = vpop.permute.xlu0 %103
    %vm105 = vcmp.lt.s32.totalorder %v61, 15
    %v106 = vsel %vm105, %v102, %v104
    %v107 = vsel %vm105, %v104, %v102
    %s108 = scalar_lea.vmem [#allocation5], 4
    %v109 = vld [vmem:[%s108] sm:$0x3]
    %v111 = vlaneseq
    %v112 = vshrl.u32 %v111, 7
    %v113 = vsub.s32 0, %v112
    %v114 = vrot.slane %v109, %v113
    %v115 = vlaneseq
    %v116 = vshrl.u32 %v115, 7
    %v117 = vsub.s32 1, %v116
    %v118 = vrot.slane %v109, %v117
    %v121 = vmul.f32 %v107, %v114
    %v122 = vmul.f32 %v106, %v118
    %123 = vrot.lane.b32.xlu0 %v54, 1
    %v124 = vpop.permute.xlu0 %123
    %125 = vrot.lane.b32.xlu0 %v55, 1
    %v126 = vpop.permute.xlu0 %125
    %vm127 = vcmp.lt.s32.totalorder %v61, 1
    %v128 = vsel %vm127, %v124, %v126
    %v129 = vsel %vm127, %v126, %v124
    %s130 = scalar_lea.vmem [#allocation5], 6
    %v131 = vld [vmem:[%s130] sm:$0x3]
    %v133 = vlaneseq
    %v134 = vshrl.u32 %v133, 7
    %v135 = vsub.s32 0, %v134
    %v136 = vrot.slane %v131, %v135
    %v137 = vlaneseq
    %v138 = vshrl.u32 %v137, 7
    %v139 = vsub.s32 1, %v138
    %v140 = vrot.slane %v131, %v139
    %v143 = vmul.f32 %v129, %v136
    %v144 = vmul.f32 %v128, %v140
    %s145 = scalar_lea.vmem [#allocation5], 8
    %v146 = vld [vmem:[%s145] sm:$0x3]
    %v148 = vlaneseq
    %v149 = vshrl.u32 %v148, 7
    %v150 = vsub.s32 0, %v149
    %v151 = vrot.slane %v146, %v150
    %v152 = vlaneseq
    %v153 = vshrl.u32 %v152, 7
    %v154 = vsub.s32 1, %v153
    %v155 = vrot.slane %v146, %v154
    %v158 = vmul.f32 %v54, %v151
    %v159 = vmul.f32 %v55, %v155
    %160 = vrot.lane.b32.xlu0 %v54, 127
    %v161 = vpop.permute.xlu0 %160
    %162 = vrot.lane.b32.xlu0 %v55, 127
    %v163 = vpop.permute.xlu0 %162
    %vm164 = vcmp.lt.s32.totalorder %v61, 127
    %v165 = vsel %vm164, %v161, %v163
    %v166 = vsel %vm164, %v163, %v161
    %s167 = scalar_lea.vmem [#allocation5], 10
    %v168 = vld [vmem:[%s167] sm:$0x3]
    %v170 = vlaneseq
    %v171 = vshrl.u32 %v170, 7
    %v172 = vsub.s32 0, %v171
    %v173 = vrot.slane %v168, %v172
    %v174 = vlaneseq
    %v175 = vshrl.u32 %v174, 7
    %v176 = vsub.s32 1, %v175
    %v177 = vrot.slane %v168, %v176
    %v180 = vmul.f32 %v165, %v173
    %v181 = vmul.f32 %v166, %v177
    %182 = vrot.lane.b32.xlu0 %v54, 113
    %v183 = vpop.permute.xlu0 %182
    %184 = vrot.lane.b32.xlu0 %v55, 113
    %v185 = vpop.permute.xlu0 %184
    %vm186 = vcmp.lt.s32.totalorder %v61, 113
    %v187 = vsel %vm186, %v183, %v185
    %v188 = vsel %vm186, %v185, %v183
    %s189 = scalar_lea.vmem [#allocation5], 12
    %v190 = vld [vmem:[%s189] sm:$0x3]
    %v192 = vlaneseq
    %v193 = vshrl.u32 %v192, 7
    %v194 = vsub.s32 0, %v193
    %v195 = vrot.slane %v190, %v194
    %v196 = vlaneseq
    %v197 = vshrl.u32 %v196, 7
    %v198 = vsub.s32 1, %v197
    %v199 = vrot.slane %v190, %v198
    %v202 = vmul.f32 %v187, %v195
    %v203 = vmul.f32 %v188, %v199
    %204 = vrot.lane.b32.xlu0 %v54, 112
    %v205 = vpop.permute.xlu0 %204
    %206 = vrot.lane.b32.xlu0 %v55, 112
    %v207 = vpop.permute.xlu0 %206
    %vm208 = vcmp.lt.s32.totalorder %v61, 112
    %v209 = vsel %vm208, %v205, %v207
    %v210 = vsel %vm208, %v207, %v205
    %s211 = scalar_lea.vmem [#allocation5], 14
    %v212 = vld [vmem:[%s211] sm:$0x3]
    %v214 = vlaneseq
    %v215 = vshrl.u32 %v214, 7
    %v216 = vsub.s32 0, %v215
    %v217 = vrot.slane %v212, %v216
    %v218 = vlaneseq
    %v219 = vshrl.u32 %v218, 7
    %v220 = vsub.s32 1, %v219
    %v221 = vrot.slane %v212, %v220
    %v224 = vmul.f32 %v209, %v217
    %v225 = vmul.f32 %v210, %v221
    %226 = vrot.lane.b32.xlu0 %v54, 111
    %v227 = vpop.permute.xlu0 %226
    %228 = vrot.lane.b32.xlu0 %v55, 111
    %v229 = vpop.permute.xlu0 %228
    %vm230 = vcmp.lt.s32.totalorder %v61, 111
    %v231 = vsel %vm230, %v227, %v229
    %v232 = vsel %vm230, %v229, %v227
    %s233 = scalar_lea.vmem [#allocation5], 16
    %v234 = vld [vmem:[%s233] sm:$0x3]
    %v236 = vlaneseq
    %v237 = vshrl.u32 %v236, 7
    %v238 = vsub.s32 0, %v237
    %v239 = vrot.slane %v234, %v238
    %v240 = vlaneseq
    %v241 = vshrl.u32 %v240, 7
    %v242 = vsub.s32 1, %v241
    %v243 = vrot.slane %v234, %v242
    %v246 = vmul.f32 %v231, %v239
    %v247 = vmul.f32 %v232, %v243
    %v248 = vld [vmem:[#allocation7] sm:$0xff]
    %v249 = vld [vmem:[#allocation7 + $0x8] sm:$0xff]
    %vm250 = vcmask 588800
    %v252 = vsel %vm250, %v248, 0
    %v255 = vsel %vm250, %v249, 0
    %257 = vmatprep.subr.mxu0 %v78
    %258 = vmatpush1.msra.mxu0 %v77
    %259 = vmatprep.subr.mxu0 %v100
    %260 = vmatpush1.msra.mxu0 %v99
    %261 = vmatprep.subr.mxu0 %v122
    %262 = vmatpush1.msra.mxu0 %v121
    %263 = vmatprep.subr.mxu0 %v144
    %264 = vmatpush1.msra.mxu0 %v143
    %265 = vmatprep.subr.mxu0 %v159
    %266 = vmatpush1.msra.mxu0 %v158
    %267 = vmatprep.subr.mxu0 %v181
    %268 = vmatpush1.msra.mxu0 %v180
    %269 = vmatprep.subr.mxu0 %v203
    %270 = vmatpush1.msra.mxu0 %v202
    %271 = vmatprep.subr.mxu0 %v225
    %272 = vmatpush1.msra.mxu0 %v224
    %273 = vmatprep.subr.mxu0 %v247
    %274 = vmatpush1.msra.mxu0 %v246
    %275 = vmatprep.subr.mxu0 0.0
    %276 = vmatpush1.msra.mxu0 0.0
    %277 = vmatprep.subr.mxu0 0.0
    %278 = vmatpush1.msra.mxu0 0.0
    %279 = vmatprep.subr.mxu0 0.0
    %280 = vmatpush1.msra.mxu0 0.0
    %281 = vmatprep.subr.mxu0 0.0
    %282 = vmatpush1.msra.mxu0 0.0
    %283 = vmatprep.subr.mxu0 0.0
    %284 = vmatpush1.msra.mxu0 0.0
    %285 = vmatprep.subr.mxu0 0.0
    %286 = vmatpush1.msra.mxu0 0.0
    %287 = vmatprep.subr.mxu0 0.0
    %288 = vmatpush1.msra.mxu0 0.0
    %289 = vmatprep.subr.mxu0 0.0
    %290 = vmatpush1.msra.mxu0 0.0
    %291 = vmatprep.subr.mxu0 0.0
    %292 = vmatpush1.msra.mxu0 0.0
    %293 = vmatprep.subr.mxu0 0.0
    %294 = vmatpush1.msra.mxu0 0.0
    %295 = vmatprep.subr.mxu0 0.0
    %296 = vmatpush1.msra.mxu0 0.0
    %297 = vmatprep.subr.mxu0 0.0
    %298 = vmatpush1.msra.mxu0 0.0
    %299 = vmatprep.subr.mxu0 0.0
    %300 = vmatpush1.msra.mxu0 0.0
    %301 = vmatprep.subr.mxu0 0.0
    %302 = vmatpush1.msra.mxu0 0.0
    %303 = vmatprep.subr.mxu0 0.0
    %304 = vmatpush1.msra.mxu0 0.0
    %305 = vmatprep.subr.mxu0 0.0
    %306 = vmatpush1.msra.mxu0 0.0
    %307 = vmatprep.subr.mxu0 0.0
    %308 = vmatpush1.msra.mxu0 0.0
    %309 = vmatprep.subr.mxu0 0.0
    %310 = vmatpush1.msra.mxu0 0.0
    %311 = vmatprep.subr.mxu0 0.0
    %312 = vmatpush1.msra.mxu0 0.0
    %313 = vmatprep.subr.mxu0 0.0
    %314 = vmatpush1.msra.mxu0 0.0
    %315 = vmatprep.subr.mxu0 0.0
    %316 = vmatpush1.msra.mxu0 0.0
    %317 = vmatprep.subr.mxu0 0.0
    %318 = vmatpush1.msra.mxu0 0.0
    %319 = vmatprep.subr.mxu0 0.0
    %320 = vmatpush1.msra.mxu0 0.0
    %321 = vmatprep.mubr.f32.mxu0 0.0
    %322 = vmatmul.mubr.f32.gmra.mrb[0].mxu0 %v252
    %v323 = vpop.f32.mrb[0].mxu0
    %v324 = vadd.f32 0.0, %v323
    %v325 = vpop.f32.mrb[0].mxu0
    %v326 = vadd.f32 0.0, %v325
    %327 = vmatprep.mubr.f32.mxu0 0.0
    %328 = vmatmul.mubr.f32.gmra.mrb[0].mxu0 %v255
    %v329 = vpop.f32.mrb[0].mxu0
    %v330 = vadd.f32 0.0, %v329
    %v331 = vpop.f32.mrb[0].mxu0
    %v332 = vadd.f32 0.0, %v331
    %333 = vdwg.mxu0
    %334 = vst [vmem:[#allocation8] sm:$0xff] %v324
    %335 = vst [vmem:[#allocation8 + $0x8] sm:$0xff] %v326
    %336 = vst [vmem:[#allocation8 + $0x10] sm:$0xff] %v330
    %337 = vst [vmem:[#allocation8 + $0x18] sm:$0xff] %v332
    // Predicated region
    $region26: #{tpu_custom_call.1} parent=1 // pred_check
      _
    $region27: #{tpu_custom_call.1} parent=1 // pred_check_branch
      %339 = sbr.rel (0) target = $region29
    $region28: #{tpu_custom_call.1} parent=1 // pred_region
      %s341 = ssub.s32 512, 512
      %342 = vsyncadd [#allocation4], %s341
      %s343 = sshll.u32 [#allocation8], 4
      %s344 = int_to_ptr.vmem [resolvable:$true] %s343
      %349 = dma.vmem_to_hbm [thread:$0]  %s344, 512, %s3, [#allocation4], 256, 256, 16
    $region29: #{tpu_custom_call.1} parent=1 // pred_fallthru
      _
    // Predicated region
    $region30: #{tpu_custom_call.1} parent=1 // pred_check
      _
    $region31: #{tpu_custom_call.1} parent=1 // pred_check_branch
      %351 = sbr.rel (0) target = $region33
    $region32: #{tpu_custom_call.1} parent=1 // pred_region
      %352 = dma.done [#allocation4], 512
    $region33: #{tpu_custom_call.1} parent=1 // pred_fallthru
      _
    %353 = vsyncpa [#allocation3], 1
    %354 = vsyncpa [#allocation6], 1
    %355 = vsyncpa [#allocation4], 1

</llo_original>
